<compile_context>
chip_gen: v7x
topology: tpu7x:2x2x1
jax: 0.10.0
libtpu: 0.0.40
codegen_flags: <defaults>
</compile_context>

<pallas_src>
import jax
import jax.numpy as jnp
from jax.experimental import pallas as pl
from jax.experimental.pallas import tpu as pltpu

GAMMA = 2      # integer gamma -> explicit square on the VPU (no pow/log/exp)
EPS = 1e-7     # TODO(synk): declared in the PyTorch module but unused in its forward pass


def _focal_loss_kernel(n_ref, logits_ref, target_ref, out_ref):
    """One grid step: focal-loss partial sum for a (TILE_N, C) tile of rows."""
    i = pl.program_id(0)
    x = logits_ref[...].astype(jnp.float32)            # (TILE_N, C), upcast in-kernel
    t = target_ref[...]                                # (TILE_N, 1) int32
    tn, c = x.shape

    # Numerically-stable softmax pieces.
    m = jnp.max(x, axis=-1, keepdims=True)             # (TILE_N, 1)
    z = x - m
    ez = jnp.exp(z)                                    # one EUP exp per element
    sum_ez = jnp.sum(ez, axis=-1, keepdims=True)       # (TILE_N, 1)

    # Gather target-class logit via a one-hot mask (no dynamic gather on TPU).
    cls_idx = jax.lax.broadcasted_iota(jnp.int32, (tn, c), 1)
    onehot = cls_idx == t
    tgt_z = jnp.sum(jnp.where(onehot, z, 0.0), axis=-1, keepdims=True)

    # ce = logsumexp(x) - x[target] ;  pt = exp(-ce)  (row-wise exp instead of
    # a second masked C-wide reduction).
    ce = jnp.log(sum_ez) - tgt_z                       # (TILE_N, 1)
    pt = jnp.exp(-ce)                                  # (TILE_N, 1)

    w = jnp.maximum(1.0 - pt, 0.0)                     # clamp fp noise at pt ~ 1
    focal = w * w * ce                                 # gamma=2 -> explicit square

    # Zero out rows past the global N (last partial block reads garbage HBM;
    # math above is row-local and select does not propagate unselected values).
    row_id = i * tn + jax.lax.broadcasted_iota(jnp.int32, (tn, 1), 0)
    focal = jnp.where(row_id < n_ref[0], focal, 0.0)

    # Per-tile partial sum broadcast into a lane-dense (1, 8, 128) output block
    # (unmasked vst; grid axis stays "parallel" for v7x's two TensorCores).
    out_ref[...] = jnp.full(out_ref.shape, jnp.sum(focal), dtype=jnp.float32)


def _round_up(x, m):
    return (x + m - 1) // m * m


def _cdiv(a, b):
    return (a + b - 1) // b


def _vmem_budgets():
    """Returns (tile working-set budget, Mosaic vmem_limit_bytes), per chip gen."""
    cap = 128 * 1024 * 1024
    try:
        info = pltpu.get_tpu_info()
        cap = getattr(info, "vmem_capacity_bytes", cap) or cap
    except Exception:
        pass
    if cap <= 64 * 1024 * 1024:
        # v7x: 64 MiB physical per TensorCore -> stay conservative.
        return 24 * 1024 * 1024, 48 * 1024 * 1024
    # v5e / v6e: 128 MiB physical -> use it (default scoped limit is 16/32 MiB).
    return 56 * 1024 * 1024, 96 * 1024 * 1024


def _pick_tile_n(n, c, in_itemsize, budget):
    """Largest row tile whose double-buffered VMEM footprint fits `budget`."""
    pack = max(8, 32 // in_itemsize)     # sublane pack: 8 f32 / 16 bf16 / 32 int8
    c_pad = _round_up(c, 128)            # lane-padded class dim in VMEM
    per_row = (
        2 * c_pad * in_itemsize          # logits block, double-buffered
        + 2 * 128 * 4                    # (tile_n,1) i32 targets pad to 128 lanes, x2 bufs
        + 6 * c_pad * 4                  # ~6 C-wide f32/i32 temporaries
    )
    tile = budget // max(per_row, 1)
    tile = min(tile, 8192, _round_up(n, pack))   # never exceed N (rounded to pack)
    tile = max(pack, (tile // pack) * pack)
    return tile, pack


def focal_loss(logits, targets):
    """logits: (N, C) float32/bfloat16, targets: (N,) int -> scalar float32."""
    n, c = logits.shape
    itemsize = logits.dtype.itemsize
    budget, vmem_limit = _vmem_budgets()
    tile_n, pack = _pick_tile_n(n, c, itemsize, budget)

    # Megacore (v7x): if everything fits in one tile but N is big enough to
    # split, use >= 2 grid steps so both TensorCores participate. Costs one
    # extra ~0.35 us grid step on single-TC chips -- negligible.
    if tile_n >= n and n > 2 * pack:
        tile_n = max(pack, _round_up(_cdiv(n, 2), pack))

    num_tiles = _cdiv(n, tile_n)
    targets_2d = targets.astype(jnp.int32).reshape(n, 1)
    n_arr = jnp.array([n], dtype=jnp.int32)   # scalar-prefetched global row count

    grid_spec = pltpu.PrefetchScalarGridSpec(
        num_scalar_prefetch=1,
        grid=(num_tiles,),
        in_specs=[
            pl.BlockSpec((tile_n, c), lambda i, n_ref: (i, 0)),
            pl.BlockSpec((tile_n, 1), lambda i, n_ref: (i, 0)),
        ],
        out_specs=pl.BlockSpec((1, 8, 128), lambda i, n_ref: (i, 0, 0)),
    )

    cost = pl.CostEstimate(
        flops=8 * n * c,
        transcendentals=n * c + 2 * n,
        bytes_accessed=n * c * itemsize + n * 4 + num_tiles * 8 * 128 * 4,
    )

    partial = pl.pallas_call(
        _focal_loss_kernel,
        out_shape=jax.ShapeDtypeStruct((num_tiles, 8, 128), jnp.float32),
        grid_spec=grid_spec,
        compiler_params=pltpu.CompilerParams(
            dimension_semantics=("parallel",),
            vmem_limit_bytes=vmem_limit,
        ),
        cost_estimate=cost,
    )(n_arr, logits, targets_2d)

    # Mean over the *global* N, done exactly once outside the kernel.
    return jnp.sum(partial[:, 0, 0]) / jnp.float32(n)


def _reference(logits, targets):
    logp = jax.nn.log_softmax(logits.astype(jnp.float32), axis=-1)
    ce = -jnp.take_along_axis(logp, targets[:, None], axis=-1)[:, 0]
    pt = jnp.exp(-ce)
    return jnp.mean(((1.0 - pt) ** GAMMA) * ce)


if __name__ == "__main__":
    key = jax.random.PRNGKey(0)

    # Case 1: tiny, N not a multiple of 8 -> single partial block + tail mask.
    k1, k2, k3, k4 = jax.random.split(key, 4)
    N1, C1 = 10, 32
    logits1 = jax.random.normal(k1, (N1, C1), dtype=jnp.float32)
    targets1 = jax.random.randint(k2, (N1,), 0, C1, dtype=jnp.int32)
    loss1 = focal_loss(logits1, targets1)
    jax.block_until_ready(loss1)
    ref1 = _reference(logits1, targets1)
    assert jnp.allclose(loss1, ref1, atol=1e-5, rtol=1e-5), (loss1, ref1)

    # Case 2: multi-tile path (megacore split), N % 8 != 0, unpadded tail block.
    N2, C2 = 333, 40
    logits2 = jax.random.normal(k3, (N2, C2), dtype=jnp.float32)
    targets2 = jax.random.randint(k4, (N2,), 0, C2, dtype=jnp.int32)
    loss2 = focal_loss(logits2, targets2)
    jax.block_until_ready(loss2)
    ref2 = _reference(logits2, targets2)
    assert jnp.allclose(loss2, ref2, atol=1e-5, rtol=1e-4), (loss2, ref2)

    print("KERNEL_OK")
</pallas_src>

<mosaic_0001>
module attributes {stable_mosaic.version = 11 : i64} {
  func.func @_focal_loss_kernel(%arg0: i32, %arg1: memref<1xi32, #tpu.memory_space<smem>>, %arg2: memref<16x32xf32, #tpu.memory_space<vmem>>, %arg3: memref<16x1xi32, #tpu.memory_space<vmem>>, %arg4: memref<1x8x128xf32, #tpu.memory_space<vmem>>) attributes {dimension_semantics = [#tpu.dimension_semantics<parallel>], iteration_bounds = array<i64: 1>, scalar_prefetch = 1 : i64, scratch_operands = 0 : i64, tpu.core_type = #tpu.core_type<tc>, window_params = [{transform_indices = @transform_0, window_bounds = array<i64: 16, 32>}, {transform_indices = @transform_1, window_bounds = array<i64: 16, 1>}, {transform_indices = @transform_2, window_bounds = array<i64: 1, 8, 128>}]} {
    %c0 = arith.constant 0 : index
    %c0_0 = arith.constant 0 : index
    %0 = vector.load %arg2[%c0, %c0_0] : memref<16x32xf32, #tpu.memory_space<vmem>>, vector<16x32xf32>
    %c0_1 = arith.constant 0 : index
    %c0_2 = arith.constant 0 : index
    %1 = vector.load %arg3[%c0_1, %c0_2] : memref<16x1xi32, #tpu.memory_space<vmem>>, vector<16x1xi32>
    %cst = arith.constant dense<0xFF800000> : vector<16xf32>
    %2 = vector.multi_reduction <maximumf>, %0, %cst [1] : vector<16x32xf32> to vector<16xf32>
    %3 = vector.shape_cast %2 : vector<16xf32> to vector<16x1xf32>
    %4 = vector.broadcast %3 : vector<16x1xf32> to vector<16x32xf32>
    %5 = arith.subf %0, %4 : vector<16x32xf32>
    %6 = math.exp %5 : vector<16x32xf32>
    %cst_3 = arith.constant dense<0.000000e+00> : vector<16xf32>
    %7 = vector.multi_reduction <add>, %6, %cst_3 [1] : vector<16x32xf32> to vector<16xf32>
    %8 = vector.shape_cast %7 : vector<16xf32> to vector<16x1xf32>
    %9 = tpu.iota {dimensions = array<i32: 1>} : vector<16x32xi32>
    %10 = vector.broadcast %1 : vector<16x1xi32> to vector<16x32xi32>
    %11 = arith.cmpi eq, %9, %10 : vector<16x32xi32>
    %cst_4 = arith.constant 0.000000e+00 : f32
    %12 = vector.broadcast %cst_4 : f32 to vector<16x32xf32>
    %13 = arith.select %11, %5, %12 : vector<16x32xi1>, vector<16x32xf32>
    %cst_5 = arith.constant dense<0.000000e+00> : vector<16xf32>
    %14 = vector.multi_reduction <add>, %13, %cst_5 [1] : vector<16x32xf32> to vector<16xf32>
    %15 = vector.shape_cast %14 : vector<16xf32> to vector<16x1xf32>
    %16 = math.log %8 : vector<16x1xf32>
    %17 = arith.subf %16, %15 : vector<16x1xf32>
    %cst_6 = arith.constant 0.000000e+00 : f32
    %18 = vector.broadcast %cst_6 : f32 to vector<16x1xf32>
    %19 = arith.subf %18, %17 : vector<16x1xf32>
    %20 = math.exp %19 : vector<16x1xf32>
    %cst_7 = arith.constant 1.000000e+00 : f32
    %21 = vector.broadcast %cst_7 : f32 to vector<16x1xf32>
    %22 = arith.subf %21, %20 : vector<16x1xf32>
    %cst_8 = arith.constant 0.000000e+00 : f32
    %23 = vector.broadcast %cst_8 : f32 to vector<16x1xf32>
    %24 = arith.maximumf %22, %23 : vector<16x1xf32>
    %25 = arith.mulf %24, %24 : vector<16x1xf32>
    %26 = arith.mulf %25, %17 : vector<16x1xf32>
    %c16_i32 = arith.constant 16 : i32
    %27 = arith.muli %arg0, %c16_i32 : i32
    %28 = tpu.iota {dimensions = array<i32: 0>} : vector<16x1xi32>
    %29 = vector.broadcast %27 : i32 to vector<16x1xi32>
    %30 = arith.addi %29, %28 : vector<16x1xi32>
    %c0_9 = arith.constant 0 : index
    %31 = memref.load %arg1[%c0_9] : memref<1xi32, #tpu.memory_space<smem>>
    %32 = vector.broadcast %31 : i32 to vector<16x1xi32>
    %33 = arith.cmpi slt, %30, %32 : vector<16x1xi32>
    %cst_10 = arith.constant 0.000000e+00 : f32
    %34 = vector.broadcast %cst_10 : f32 to vector<16x1xf32>
    %35 = arith.select %33, %26, %34 : vector<16x1xi1>, vector<16x1xf32>
    %36 = vector.shape_cast %35 : vector<16x1xf32> to vector<1x16x1xf32>
    %cst_11 = arith.constant dense<0.000000e+00> : vector<1xf32>
    %37 = vector.multi_reduction <add>, %36, %cst_11 [1, 2] : vector<1x16x1xf32> to vector<1xf32>
    %38 = vector.shape_cast %37 : vector<1xf32> to vector<1x1x1xf32>
    %39 = vector.extract %38[0, 0, 0] : f32 from vector<1x1x1xf32>
    %40 = vector.broadcast %39 : f32 to vector<1x8x128xf32>
    %c0_12 = arith.constant 0 : index
    %c0_13 = arith.constant 0 : index
    %c0_14 = arith.constant 0 : index
    %41 = vector.load %arg4[%c0_12, %c0_13, %c0_14] : memref<1x8x128xf32, #tpu.memory_space<vmem>>, vector<1x8x128xf32>
    tpu.vector_store %arg4[%c0_12, %c0_13, %c0_14], %40 {strides = array<i32>} : memref<1x8x128xf32, #tpu.memory_space<vmem>>, vector<1x8x128xf32>,
    return
  }
  func.func @transform_0(%arg0: i32, %arg1: memref<1xi32, #tpu.memory_space<smem>>) -> (i32, i32) {
    %c0_i32 = arith.constant 0 : i32
    %c0_i32_0 = arith.constant 0 : i32
    return %arg0, %c0_i32 : i32, i32
  }
  func.func @transform_1(%arg0: i32, %arg1: memref<1xi32, #tpu.memory_space<smem>>) -> (i32, i32) {
    %c0_i32 = arith.constant 0 : i32
    %c0_i32_0 = arith.constant 0 : i32
    return %arg0, %c0_i32 : i32, i32
  }
  func.func @transform_2(%arg0: i32, %arg1: memref<1xi32, #tpu.memory_space<smem>>) -> (i32, i32, i32) {
    %c0_i32 = arith.constant 0 : i32
    %c0_i32_0 = arith.constant 0 : i32
    %c0_i32_1 = arith.constant 0 : i32
    return %arg0, %c0_i32, %c0_i32_0 : i32, i32, i32
  }
}

</mosaic_0001>

<llo_original>
// kernel: tpu_custom_call.1
$region0: #{tpu_custom_call.1}
  #allocation0 [shape = 'u32[]', space=smem, size = 0x4, offset = 0x4, fixed_abs, tag = 'smem constant byte address 0x4 - core index']
  #allocation1 [shape = 'u32[144,128]{1,0:T(1,128)}', space=vmem, size = 0x12000, scoped, tag = 'internal scratch']
  #allocation2 [shape = 's32[1]{0}', space=sflag, size = 0x4, scoped, tag = 'scoped memory for tpu_custom_call.1']
  #allocation3 [shape = 's32[1]{0:T(128)S(6)}', space=smem, size = 0x200, scoped, tag = 'prefetched SMEM operand 0']
  %s0 = inlined_call_operand.<no memory space> [shape: s32[1], index: 0, kind: input, shape index: {}]
  %s1 = inlined_call_operand.hbm [shape: f32[10,32], index: 1, kind: input, shape index: {}]
  %s2 = inlined_call_operand.hbm [shape: s32[10,1], index: 2, kind: input, shape index: {}]
  %s3 = inlined_call_operand.hbm [shape: f32[1,8,128], index: 3, kind: output, shape index: {}]
  %s4 = sld [smem:[#allocation0]]
  $region26: #{tpu_custom_call.1} parent=0
    _
  %s6 = ssub.s32 1, %s4
  %s7 = scalar_select 0, %s6, %s4
  %8 = sst [smem:[#allocation3]] %s0
  $region1: #{tpu_custom_call.1} parent=0
    #allocation4 [shape = 'u8[8192]{0}', space=vmem, size = 0x2000, scoped, tag = 'input window, operand 1, single buffered']
    #allocation5 [shape = 's32[1]{0}', space=sflag, size = 0x4, scoped, tag = 'scoped memory for tpu_custom_call.1']
    #allocation6 [shape = 's32[1]{0}', space=sflag, size = 0x4, scoped, tag = 'scoped memory for tpu_custom_call.1']
    #allocation7 [shape = 'u8[8192]{0}', space=vmem, size = 0x2000, scoped, tag = 'input window, operand 2, single buffered']
    #allocation8 [shape = 's32[1]{0}', space=sflag, size = 0x4, scoped, tag = 'scoped memory for tpu_custom_call.1']
    #allocation9 [shape = 'u8[4096]{0}', space=vmem, size = 0x1000, scoped, tag = 'output window, operand 0, single buffered']
    %9 = vsyncpa [#allocation5], 0
    %10 = vsyncpa [#allocation8], 0
    %11 = vsyncpa [#allocation6], 0
    // Predicated region
    $region2: #{tpu_custom_call.1} parent=1 // pred_check
      _
    $region3: #{tpu_custom_call.1} parent=1 // pred_check_branch
      %13 = sbr.rel (0) target = $region5
    $region4: #{tpu_custom_call.1} parent=1 // pred_region
      %s15 = ssub.s32 256, 256
      %16 = vsyncadd [#allocation5], %s15
      %s17 = sshll.u32 [#allocation4], 4
      %s18 = int_to_ptr.vmem [resolvable:$true] %s17
      %23 = dma.hbm_to_vmem [thread:$0]  %s1, 256, %s18, [#allocation5], 128, 128, 8
    $region5: #{tpu_custom_call.1} parent=1 // pred_fallthru
      _
    // Predicated region
    $region6: #{tpu_custom_call.1} parent=1 // pred_check
      _
    $region7: #{tpu_custom_call.1} parent=1 // pred_check_branch
      %25 = sbr.rel (0) target = $region9
    $region8: #{tpu_custom_call.1} parent=1 // pred_region
      %s27 = ssub.s32 256, 256
      %28 = vsyncadd [#allocation8], %s27
      %s29 = sshll.u32 [#allocation7], 4
      %s30 = int_to_ptr.vmem [resolvable:$true] %s29
      %35 = dma.hbm_to_vmem [thread:$0]  %s2, 256, %s30, [#allocation8], 128, 128, 8
    $region9: #{tpu_custom_call.1} parent=1 // pred_fallthru
      _
    // Predicated region
    $region10: #{tpu_custom_call.1} parent=1 // pred_check
      _
    $region11: #{tpu_custom_call.1} parent=1 // pred_check_branch
      %37 = sbr.rel (0) target = $region13
    $region12: #{tpu_custom_call.1} parent=1 // pred_region
      %38 = dma.done [#allocation5], 256
    $region13: #{tpu_custom_call.1} parent=1 // pred_fallthru
      _
    // Predicated region
    $region14: #{tpu_custom_call.1} parent=1 // pred_check
      _
    $region15: #{tpu_custom_call.1} parent=1 // pred_check_branch
      %40 = sbr.rel (0) target = $region17
    $region16: #{tpu_custom_call.1} parent=1 // pred_region
      %41 = dma.done [#allocation8], 256
    $region17: #{tpu_custom_call.1} parent=1 // pred_fallthru
      _
    %v42 = vld [vmem:[#allocation4] sm:$0xff]
    %v43 = vld [vmem:[#allocation4 + $0x8] sm:$0xff]
    %v44 = vld [vmem:[#allocation7] sm:$0xff]
    %v45 = vld [vmem:[#allocation7 + $0x8] sm:$0xff]
    %vm46 = vcmask 261120
    %v47 = vsel %vm46, %v42, -inf
    %48 = vmax.xlane.f32.xlu0 %v47
    %v49 = vpop.xlane.xlu0 %48
    %v50 = vsel %vm46, %v43, -inf
    %51 = vmax.xlane.f32.xlu0 %v50
    %v52 = vpop.xlane.xlu0 %51
    %v53 = vsub.f32 %v42, %v49
    %v54 = vsub.f32 %v43, %v52
    %v55 = vmul.f32 %v53, 1.442695
    %v56 = vpow.pop %v55
    %v57 = vmul.f32 %v54, 1.442695
    %v58 = vpow.pop %v57
    %v59 = vsel %vm46, %v56, 0.0
    %60 = vadd.xlane.f32.xlu0 %v59
    %v61 = vpop.xlane.xlu0 %60
    %v62 = vsel %vm46, %v58, 0.0
    %63 = vadd.xlane.f32.xlu0 %v62
    %v64 = vpop.xlane.xlu0 %63
    %v65 = vlaneseq
    %v66 = vand.u32 %v65, 127
    %67 = vset.pattern.permute.xlu0 0
    %68 = vperm.xlu0 %67, %v44
    %v69 = vpop.permute.xlu0 %68
    %70 = vset.pattern.permute.xlu0 0
    %71 = vperm.xlu0 %70, %v45
    %v72 = vpop.permute.xlu0 %71
    %vm73 = vcmp.eq.s32.totalorder %v66, %v69
    %vm74 = vcmp.eq.s32.totalorder %v66, %v72
    %v75 = vsel %vm73, %v53, 0.0
    %v76 = vsel %vm74, %v54, 0.0
    %v77 = vsel %vm46, %v75, 0.0
    %78 = vadd.xlane.f32.xlu0 %v77
    %v79 = vpop.xlane.xlu0 %78
    %v80 = vsel %vm46, %v76, 0.0
    %81 = vadd.xlane.f32.xlu0 %v80
    %v82 = vpop.xlane.xlu0 %81
    %v83 = vlog2.pop %v61
    %v84 = vmul.f32 %v83, 0.6931472
    %v85 = vlog2.pop %v64
    %v86 = vmul.f32 %v85, 0.6931472
    %v87 = vsub.f32 %v84, %v79
    %v88 = vsub.f32 %v86, %v82
    %v89 = vsub.f32 0.0, %v87
    %v90 = vsub.f32 0.0, %v88
    %v91 = vmul.f32 %v89, 1.442695
    %v92 = vpow.pop %v91
    %v93 = vmul.f32 %v90, 1.442695
    %v94 = vpow.pop %v93
    %v95 = vsub.f32 1.0, %v92
    %v96 = vsub.f32 1.0, %v94
    %v97 = vmax.f32 %v95, 0.0
    %v98 = vmax.f32 %v96, 0.0
    %v99 = vmul.f32 %v97, %v97
    %v100 = vmul.f32 %v98, %v98
    %v101 = vmul.f32 %v99, %v87
    %v102 = vmul.f32 %v100, %v88
    %s103 = smul.u32 0, 16
    %v104 = vlaneseq
    %v105 = vshrl.u32 %v104, 7
    %v106 = vadd.s32 %v105, 8
    %v107 = vstv %s103
    %v108 = vadd.s32 %v107, %v105
    %v109 = vadd.s32 %v107, %v106
    %s110 = sld [smem:[#allocation3]]
    %v111 = vstv %s110
    %vm112 = vcmp.lt.s32.totalorder %v108, %v111
    %vm113 = vcmp.lt.s32.totalorder %v109, %v111
    %v114 = vsel %vm112, %v101, 0.0
    %v115 = vsel %vm113, %v102, 0.0
    %vm116 = vcmask 7168
    %v117 = vsel %vm116, %v114, 0.0
    %v118 = vsel %vm116, %v115, 0.0
    %v119 = vadd.f32 %v117, %v118
    %120 = vadd.xlane.f32.xlu0 %v119
    %v121 = vpop.xlane.xlu0 %120
    %v122 = vrot.slane %v121, 4
    %v123 = vadd.f32 %v121, %v122
    %v124 = vrot.slane %v123, 2
    %v125 = vadd.f32 %v123, %v124
    %v126 = vrot.slane %v125, 1
    %v127 = vadd.f32 %v125, %v126
    %s128 = vtos %v127
    %v129 = vstv %s128
    %130 = vst [vmem:[#allocation9] sm:$0xff] %v129
    // Predicated region
    $region18: #{tpu_custom_call.1} parent=1 // pred_check
      _
    $region19: #{tpu_custom_call.1} parent=1 // pred_check_branch
      %132 = sbr.rel (0) target = $region21
    $region20: #{tpu_custom_call.1} parent=1 // pred_region
      %s134 = ssub.s32 128, 128
      %135 = vsyncadd [#allocation6], %s134
      %s137 = sshll.u32 [#allocation9], 4
      %s138 = int_to_ptr.vmem [resolvable:$true] %s137
      %140 = dma.vmem_to_hbm [thread:$0]  %s138, 128, %s3, [#allocation6]
    $region21: #{tpu_custom_call.1} parent=1 // pred_fallthru
      _
    // Predicated region
    $region22: #{tpu_custom_call.1} parent=1 // pred_check
      _
    $region23: #{tpu_custom_call.1} parent=1 // pred_check_branch
      %142 = sbr.rel (0) target = $region25
    $region24: #{tpu_custom_call.1} parent=1 // pred_region
      %143 = dma.done [#allocation6], 128
    $region25: #{tpu_custom_call.1} parent=1 // pred_fallthru
      _
    %144 = vsyncpa [#allocation5], 1
    %145 = vsyncpa [#allocation8], 1
    %146 = vsyncpa [#allocation6], 1

</llo_original>
